<compile_context>
chip_gen: v7x
topology: tpu7x:2x2x1
jax: 0.10.0
libtpu: 0.0.40
codegen_flags: <defaults>
</compile_context>

<pallas_src>
import functools
import math
import re

import jax
import jax.numpy as jnp
from jax.experimental import pallas as pl
from jax.experimental.pallas import tpu as pltpu


def _tpu_generation():
    """Best-effort TPU generation (5, 6, 7, ...) parsed from device_kind."""
    try:
        kind = jax.devices()[0].device_kind.lower()
    except Exception:
        return None
    m = re.search(r"(\d+)", kind)
    return int(m.group(1)) if m else None


def _hadamard_kernel(w_ref, x_ref, o_ref, *, low_bound, up_bound, compute_dtype):
    # NOTE: purely elementwise. Ragged last blocks may carry garbage in the
    # out-of-bounds lanes/rows of x_ref; the matching output elements are
    # dropped on store, so this is benign — do NOT add block-wide reductions.
    w = jnp.clip(w_ref[...].astype(compute_dtype), low_bound, up_bound)   # (1, tn)
    x = x_ref[...].astype(compute_dtype)                                  # (tm, tn)
    o_ref[...] = (x * w).astype(o_ref.dtype)


def _maybe_buffered_spec(block_shape, index_map, buffers):
    """BlockSpec with optional deeper pipelining; construction-safe fallback."""
    if buffers > 2:
        try:
            return pl.BlockSpec(block_shape, index_map,
                                pipeline_mode=pl.Buffered(buffers))
        except Exception:
            pass
    return pl.BlockSpec(block_shape, index_map)


def hadamard(x, weight, low_bound=0.0, up_bound=1.0, *,
             target_block_bytes=None, max_lane_tile=8192, x_buffer_count=3):
    """out = x * clamp(weight, low_bound, up_bound); x: (..., F), weight: (F,).

    # TODO(synk): the PyTorch module clamps the weight Parameter in place
    # (self.weight.data = clamp(...)). This functional kernel only returns the
    # product; a training caller must persist jnp.clip(weight, low, up) itself.
    """
    orig_shape = x.shape
    assert weight.ndim == 1 and orig_shape[-1] == weight.shape[0]
    in_feature = weight.shape[0]
    if not (jnp.issubdtype(x.dtype, jnp.floating)
            and jnp.issubdtype(weight.dtype, jnp.floating)):
        raise TypeError("hadamard: x and weight must be floating point")

    if x.size == 0:
        return x

    gen = _tpu_generation()
    is_v7plus = gen is not None and gen >= 7
    has_bf16_vpu = gen is not None and gen >= 6

    # v7x HBM BW (~3.2 TB/s/TC) halves per-step transfer time vs v6e while the
    # fixed ~0.35us/step overhead stays -> bigger blocks there; 4 MiB is the
    # measured sweet spot on v5e/v6e.
    if target_block_bytes is None:
        target_block_bytes = (8 << 20) if is_v7plus else (4 << 20)

    out_dtype = jnp.result_type(x.dtype, weight.dtype)

    x2d = x.reshape(-1, in_feature)
    m = x2d.shape[0]

    # --- lane-dense fold: make the last dim a multiple of 128 when possible
    # by folding rows into lanes (weight tiled g times). Only when it divides
    # evenly, so no jnp.pad (which would cost a full extra HBM pass).
    g = 1
    if in_feature % 128 != 0:
        g_cand = 128 // math.gcd(in_feature, 128)
        if g_cand > 1 and m % g_cand == 0:
            g = g_cand
        # NOTE(vst.msk cliff): if the fold is rejected (m % g_cand != 0), the
        # ragged lane tail pays masked partial-lane stores. A bulk+remainder
        # split would need extra slice/concat HBM passes, so we accept it.
    rows = m // g
    width = g * in_feature

    xf = x2d.reshape(rows, width)
    wf = (jnp.tile(weight, g) if g > 1 else weight).reshape(1, width)

    # --- tile selection ------------------------------------------------------
    x_item = jnp.dtype(x.dtype).itemsize
    o_item = jnp.dtype(out_dtype).itemsize
    itemsize = max(x_item, o_item)
    sublane = max(8, 32 // min(x_item, o_item))      # 8 for f32, 16 for bf16

    full_row_bytes = sublane * width * itemsize
    if full_row_bytes <= target_block_bytes or width < 256:
        # Full-width block: one contiguous HBM region per DMA, weight tile
        # index constant across the whole grid (stays resident), fewer steps.
        tn = width
    elif width % 128 == 0:
        tn = min(width, max_lane_tile)               # lane tile, multiple of 128
    else:
        # Very wide, lane-misaligned width: ragged column tiling (multiple of
        # 128); only the last column block pays masked stores, and the
        # double-buffered in+out blocks stay within the VMEM budget.
        tn = min(max_lane_tile, (width // 128) * 128)

    tm = (target_block_bytes // (tn * itemsize)) // sublane * sublane
    tm = max(sublane, tm)
    if tm >= rows:
        tm = rows

    # Guarantee >=2 blocks along a "parallel" axis so both v7x TensorCores get
    # work; costs at most a few extra ~0.35us steps on single-TC chips.
    if tm >= rows and tn >= width and rows >= 2 * sublane:
        want = 8 if is_v7plus else 2
        n_blocks = max(2, min(want, rows // sublane))
        tm = min(rows, pl.cdiv(pl.cdiv(rows, n_blocks), sublane) * sublane)

    n_row = pl.cdiv(rows, tm)
    n_col = pl.cdiv(width, tn)
    # Grid order (col, row): the weight block index is constant over the inner
    # (row) axis, so the weight tile is fetched once per column block.
    grid = (n_col, n_row)

    # Compute dtype: bf16 is native on v6e/v7x VPU (halves vreg pressure vs an
    # f32 upcast and matches PyTorch bf16 arithmetic); upcast on v5e and fp16.
    if jnp.issubdtype(out_dtype, jnp.floating) and o_item < 4:
        native = has_bf16_vpu and out_dtype == jnp.bfloat16
        compute_dtype = out_dtype if native else jnp.float32
    else:
        compute_dtype = out_dtype

    # Pipeline depth for the streamed input: triple-buffer only when it fits
    # the VMEM budget and the grid is long enough to benefit.
    vmem_limit = 48 * 1024 * 1024
    block_bytes = tm * tn * itemsize
    x_buffers = x_buffer_count
    if (x_buffers + 2) * block_bytes > vmem_limit - (4 << 20) or n_col * n_row < 3:
        x_buffers = 2

    kernel = functools.partial(
        _hadamard_kernel,
        low_bound=float(low_bound),
        up_bound=float(up_bound),
        compute_dtype=compute_dtype,
    )

    def _call(buffers):
        return pl.pallas_call(
            kernel,
            out_shape=jax.ShapeDtypeStruct((rows, width), out_dtype),
            grid_spec=pltpu.PrefetchScalarGridSpec(
                num_scalar_prefetch=0,
                grid=grid,
                in_specs=[
                    pl.BlockSpec((1, tn), lambda j, i: (0, j)),    # weight
                    _maybe_buffered_spec((tm, tn), lambda j, i: (i, j), buffers),
                ],
                out_specs=pl.BlockSpec((tm, tn), lambda j, i: (i, j)),
            ),
            compiler_params=pltpu.CompilerParams(
                dimension_semantics=("parallel", "parallel"),
                vmem_limit_bytes=vmem_limit,
            ),
        )(wf, xf)

    try:
        out = _call(x_buffers)
    except Exception:
        if x_buffers <= 2:
            raise
        out = _call(2)            # retry with default double-buffering

    return out.reshape(orig_shape)


if __name__ == "__main__":
    key = jax.random.PRNGKey(0)
    k_x, k_w = jax.random.split(key)

    # Case 1: module-typical shape, feature dim folded lane-dense (32*4=128).
    batch, seq, in_feature = 2, 8, 32
    x = jax.random.normal(k_x, (batch, seq, in_feature), dtype=jnp.float32)
    weight = jax.random.uniform(
        k_w, (in_feature,), dtype=jnp.float32, minval=-0.5, maxval=1.5
    )
    low_bound, up_bound = 0.0, 1.0
    out = jax.block_until_ready(hadamard(x, weight, low_bound, up_bound))
    ref = x * jnp.clip(weight, low_bound, up_bound)
    assert out.shape == x.shape
    assert jnp.allclose(out, ref, atol=1e-6), "mismatch vs reference"

    # Case 2: multiple-of-128 feature dim, small block budget -> multi-step
    # grid with a ragged last row block (no padding pass).
    k2x, k2w = jax.random.split(jax.random.PRNGKey(1))
    x2 = jax.random.normal(k2x, (3, 37, 256), dtype=jnp.float32)
    w2 = jax.random.uniform(k2w, (256,), dtype=jnp.float32, minval=-0.5, maxval=1.5)
    out2 = jax.block_until_ready(
        hadamard(x2, w2, 0.0, 1.0, target_block_bytes=64 * 1024)
    )
    ref2 = x2 * jnp.clip(w2, 0.0, 1.0)
    assert out2.shape == x2.shape
    assert jnp.allclose(out2, ref2, atol=1e-6), "mismatch vs reference (wide)"

    # Case 3: longer grid (exercises deeper input buffering) + ragged rows.
    k3x, k3w = jax.random.split(jax.random.PRNGKey(2))
    x3 = jax.random.normal(k3x, (2, 200, 128), dtype=jnp.float32)
    w3 = jax.random.uniform(k3w, (128,), dtype=jnp.float32, minval=-0.5, maxval=1.5)
    out3 = jax.block_until_ready(
        hadamard(x3, w3, 0.0, 1.0, target_block_bytes=64 * 1024)
    )
    ref3 = x3 * jnp.clip(w3, 0.0, 1.0)
    assert jnp.allclose(out3, ref3, atol=1e-6), "mismatch vs reference (pipelined)"

    # Case 4: bf16 path (native compute on v6e/v7x, f32 upcast elsewhere).
    k4x, k4w = jax.random.split(jax.random.PRNGKey(3))
    x4 = jax.random.normal(k4x, (4, 4, 48), dtype=jnp.bfloat16)
    w4 = jax.random.uniform(
        k4w, (48,), dtype=jnp.float32, minval=-0.5, maxval=1.5
    ).astype(jnp.bfloat16)
    out4 = jax.block_until_ready(hadamard(x4, w4, 0.0, 1.0))
    ref4 = (x4.astype(jnp.float32)
            * jnp.clip(w4.astype(jnp.float32), 0.0, 1.0)).astype(jnp.bfloat16)
    assert out4.dtype == jnp.bfloat16 and out4.shape == x4.shape
    assert jnp.allclose(out4.astype(jnp.float32), ref4.astype(jnp.float32),
                        atol=2e-2), "mismatch vs reference (bf16)"

    print("KERNEL_OK")
</pallas_src>

<mosaic_0001>
module attributes {stable_mosaic.version = 11 : i64} {
  func.func @_hadamard_kernel(%arg0: i32, %arg1: i32, %arg2: memref<1x128xf32, #tpu.memory_space<vmem>>, %arg3: memref<4x128xf32, #tpu.memory_space<vmem>>, %arg4: memref<4x128xf32, #tpu.memory_space<vmem>>) attributes {dimension_semantics = [#tpu.dimension_semantics<parallel>, #tpu.dimension_semantics<parallel>], iteration_bounds = array<i64: 1, 1>, scalar_prefetch = 0 : i64, scratch_operands = 0 : i64, tpu.core_type = #tpu.core_type<tc>, window_params = [{transform_indices = @transform_0, window_bounds = array<i64: 1, 128>}, {transform_indices = @transform_1, window_bounds = array<i64: 4, 128>}, {transform_indices = @transform_2, window_bounds = array<i64: 4, 128>}]} {
    %c0 = arith.constant 0 : index
    %c0_0 = arith.constant 0 : index
    %0 = vector.load %arg2[%c0, %c0_0] : memref<1x128xf32, #tpu.memory_space<vmem>>, vector<1x128xf32>
    %cst = arith.constant 0.000000e+00 : f32
    %cst_1 = arith.constant 1.000000e+00 : f32
    %1 = vector.broadcast %cst : f32 to vector<1x128xf32>
    %2 = arith.maximumf %1, %0 : vector<1x128xf32>
    %3 = vector.broadcast %cst_1 : f32 to vector<1x128xf32>
    %4 = arith.minimumf %3, %2 : vector<1x128xf32>
    %c0_2 = arith.constant 0 : index
    %c0_3 = arith.constant 0 : index
    %5 = vector.load %arg3[%c0_2, %c0_3] : memref<4x128xf32, #tpu.memory_space<vmem>>, vector<4x128xf32>
    %6 = vector.broadcast %4 : vector<1x128xf32> to vector<4x128xf32>
    %7 = arith.mulf %5, %6 : vector<4x128xf32>
    %c0_4 = arith.constant 0 : index
    %c0_5 = arith.constant 0 : index
    %8 = vector.load %arg4[%c0_4, %c0_5] : memref<4x128xf32, #tpu.memory_space<vmem>>, vector<4x128xf32>
    tpu.vector_store %arg4[%c0_4, %c0_5], %7 {strides = array<i32>} : memref<4x128xf32, #tpu.memory_space<vmem>>, vector<4x128xf32>,
    return
  }
  func.func @transform_0(%arg0: i32, %arg1: i32) -> (i32, i32) {
    %c0_i32 = arith.constant 0 : i32
    %c0_i32_0 = arith.constant 0 : i32
    return %c0_i32, %arg0 : i32, i32
  }
  func.func @transform_1(%arg0: i32, %arg1: i32) -> (i32, i32) {
    %c0_i32 = arith.constant 0 : i32
    return %arg1, %arg0 : i32, i32
  }
  func.func @transform_2(%arg0: i32, %arg1: i32) -> (i32, i32) {
    %c0_i32 = arith.constant 0 : i32
    return %arg1, %arg0 : i32, i32
  }
}

</mosaic_0001>

<llo_original>
// kernel: tpu_custom_call.1
$region0: #{tpu_custom_call.1}
  #allocation0 [shape = 'u32[]', space=smem, size = 0x4, offset = 0x4, fixed_abs, tag = 'smem constant byte address 0x4 - core index']
  #allocation1 [shape = 'u32[144,128]{1,0:T(1,128)}', space=vmem, size = 0x12000, scoped, tag = 'internal scratch']
  %s0 = inlined_call_operand.hbm [shape: f32[1,128], index: 0, kind: input, shape index: {}]
  %s1 = inlined_call_operand.hbm [shape: f32[4,128], index: 1, kind: input, shape index: {}]
  %s2 = inlined_call_operand.hbm [shape: f32[4,128], index: 2, kind: output, shape index: {}]
  %s3 = sld [smem:[#allocation0]]
  $region26: #{tpu_custom_call.1} parent=0
    _
  %s5 = ssub.s32 1, %s3
  %s6 = scalar_select 0, %s5, %s3
  $region1: #{tpu_custom_call.1} parent=0
    #allocation2 [shape = 'u8[512]{0}', space=vmem, size = 0x400, scoped, tag = 'input window, operand 0, single buffered']
    #allocation3 [shape = 's32[1]{0}', space=sflag, size = 0x4, scoped, tag = 'scoped memory for tpu_custom_call.1']
    #allocation4 [shape = 's32[1]{0}', space=sflag, size = 0x4, scoped, tag = 'scoped memory for tpu_custom_call.1']
    #allocation5 [shape = 'u8[2048]{0}', space=vmem, size = 0x800, scoped, tag = 'input window, operand 1, single buffered']
    #allocation6 [shape = 's32[1]{0}', space=sflag, size = 0x4, scoped, tag = 'scoped memory for tpu_custom_call.1']
    #allocation7 [shape = 'u8[2048]{0}', space=vmem, size = 0x800, scoped, tag = 'output window, operand 0, single buffered']
    %7 = vsyncpa [#allocation3], 0
    %8 = vsyncpa [#allocation6], 0
    %9 = vsyncpa [#allocation4], 0
    // Predicated region
    $region2: #{tpu_custom_call.1} parent=1 // pred_check
      _
    $region3: #{tpu_custom_call.1} parent=1 // pred_check_branch
      %11 = sbr.rel (0) target = $region5
    $region4: #{tpu_custom_call.1} parent=1 // pred_region
      %s13 = ssub.s32 16, 16
      %14 = vsyncadd [#allocation3], %s13
      %s16 = sshll.u32 [#allocation2], 4
      %s17 = int_to_ptr.vmem [resolvable:$true] %s16
      %19 = dma.hbm_to_vmem [thread:$0]  %s0, 16, %s17, [#allocation3]
    $region5: #{tpu_custom_call.1} parent=1 // pred_fallthru
      _
    // Predicated region
    $region6: #{tpu_custom_call.1} parent=1 // pred_check
      _
    $region7: #{tpu_custom_call.1} parent=1 // pred_check_branch
      %21 = sbr.rel (0) target = $region9
    $region8: #{tpu_custom_call.1} parent=1 // pred_region
      %s23 = ssub.s32 64, 64
      %24 = vsyncadd [#allocation6], %s23
      %s26 = sshll.u32 [#allocation5], 4
      %s27 = int_to_ptr.vmem [resolvable:$true] %s26
      %29 = dma.hbm_to_vmem [thread:$0]  %s1, 64, %s27, [#allocation6]
    $region9: #{tpu_custom_call.1} parent=1 // pred_fallthru
      _
    // Predicated region
    $region10: #{tpu_custom_call.1} parent=1 // pred_check
      _
    $region11: #{tpu_custom_call.1} parent=1 // pred_check_branch
      %31 = sbr.rel (0) target = $region13
    $region12: #{tpu_custom_call.1} parent=1 // pred_region
      %32 = dma.done [#allocation3], 16
    $region13: #{tpu_custom_call.1} parent=1 // pred_fallthru
      _
    // Predicated region
    $region14: #{tpu_custom_call.1} parent=1 // pred_check
      _
    $region15: #{tpu_custom_call.1} parent=1 // pred_check_branch
      %34 = sbr.rel (0) target = $region17
    $region16: #{tpu_custom_call.1} parent=1 // pred_region
      %35 = dma.done [#allocation6], 64
    $region17: #{tpu_custom_call.1} parent=1 // pred_fallthru
      _
    %v36 = vld [vmem:[#allocation2] sm:$0x1]
    %v37 = vmax.f32 %v36, 0.0
    %v38 = vmin.f32 %v37, 1.0
    %v39 = vld [vmem:[#allocation5] sm:$0xf]
    %v41 = vlaneseq
    %v42 = vshrl.u32 %v41, 7
    %v43 = vsub.s32 0, %v42
    %v44 = vrot.slane %v38, %v43
    %v46 = vmul.f32 %v39, %v44
    %47 = vst [vmem:[#allocation7] sm:$0xf] %v46
    // Predicated region
    $region18: #{tpu_custom_call.1} parent=1 // pred_check
      _
    $region19: #{tpu_custom_call.1} parent=1 // pred_check_branch
      %49 = sbr.rel (0) target = $region21
    $region20: #{tpu_custom_call.1} parent=1 // pred_region
      %s51 = ssub.s32 64, 64
      %52 = vsyncadd [#allocation4], %s51
      %s54 = sshll.u32 [#allocation7], 4
      %s55 = int_to_ptr.vmem [resolvable:$true] %s54
      %57 = dma.vmem_to_hbm [thread:$0]  %s55, 64, %s2, [#allocation4]
    $region21: #{tpu_custom_call.1} parent=1 // pred_fallthru
      _
    // Predicated region
    $region22: #{tpu_custom_call.1} parent=1 // pred_check
      _
    $region23: #{tpu_custom_call.1} parent=1 // pred_check_branch
      %59 = sbr.rel (0) target = $region25
    $region24: #{tpu_custom_call.1} parent=1 // pred_region
      %60 = dma.done [#allocation4], 64
    $region25: #{tpu_custom_call.1} parent=1 // pred_fallthru
      _
    %61 = vsyncpa [#allocation3], 1
    %62 = vsyncpa [#allocation6], 1
    %63 = vsyncpa [#allocation4], 1

</llo_original>
